<compile_context>
chip_gen: v7x
topology: tpu7x:2x2x1
jax: 0.10.0
libtpu: 0.0.40
codegen_flags: <defaults>
</compile_context>

<pallas_src>
import functools

import jax
import jax.numpy as jnp
from jax.experimental import pallas as pl
from jax.experimental.pallas import tpu as pltpu

_LANE = 128      # vreg lane width
_SUBLANE = 8     # f32 sublane count
_MAX_TILE_B = 512  # measured sweet spot for large batches (halve on v7x if VMEM-tight)


def _round_up(x, m):
    return (x + m - 1) // m * m


def _mlp_kernel(x_ref, w0_ref, b0_ref, w1_ref, b1_ref, w2_ref, b2_ref, o_ref):
    """Fused 3-layer MLP on one batch tile: relu(x@W0+b0) -> relu(.@W1+b1) -> .@W2+b2.

    Matmuls run with bf16 inputs / f32 accumulation (MXU fast path on
    v5e/v6e/v7x); bias add and ReLU stay in f32 (v5e VPU has no bf16).
    """
    x = x_ref[...].astype(jnp.bfloat16)
    h0 = jnp.dot(x, w0_ref[...].astype(jnp.bfloat16),
                 preferred_element_type=jnp.float32) + b0_ref[...]
    h0 = jnp.maximum(h0, 0.0)
    h1 = jnp.dot(h0.astype(jnp.bfloat16), w1_ref[...].astype(jnp.bfloat16),
                 preferred_element_type=jnp.float32) + b1_ref[...]
    h1 = jnp.maximum(h1, 0.0)
    out = jnp.dot(h1.astype(jnp.bfloat16), w2_ref[...].astype(jnp.bfloat16),
                  preferred_element_type=jnp.float32) + b2_ref[...]
    o_ref[...] = out.astype(o_ref.dtype)


@functools.partial(jax.jit, static_argnames=("epoch",))
def mlp_forward(x, params, epoch):
    """Replicates MLP.forward(x, epoch) for epoch < 4.

    Returns (out, f_gate0, f_gate1, f_gate2).
    """
    if epoch >= 4:
        # TODO(synk): SNN-gated path (epoch >= 4) not implementable without SNN source.
        raise NotImplementedError("epoch >= 4 branch requires the SNN submodule")

    w0, b0, w1, b1, w2, b2 = params
    batch = x.shape[0]
    fc_in = w0.shape[0]
    fc_dims1 = w1.shape[0]
    fc_dims2 = w2.shape[0]
    class_num = w2.shape[1]

    # --- pad every feature dim to a multiple of 128 lanes (zero padding) ----
    fc_in_p = _round_up(fc_in, _LANE)
    d1_p = _round_up(fc_dims1, _LANE)
    d2_p = _round_up(fc_dims2, _LANE)
    c_p = _round_up(class_num, _LANE)

    # --- batch tiling: sublane-aligned tile, batch padded to tile multiple ---
    tile_b = min(_MAX_TILE_B, _round_up(batch, _SUBLANE))
    batch_p = _round_up(batch, tile_b)

    # o = x.view(x.size(0), -1), padded to (batch_p, fc_in_p)
    o = x.reshape(batch, -1).astype(jnp.float32)
    assert o.shape[1] == fc_in, f"flattened input {o.shape[1]} != fc_in {fc_in}"
    o = jnp.pad(o, ((0, batch_p - batch), (0, fc_in_p - fc_in)))

    # zero-padded weights / biases (padded rows contribute 0; padded output
    # columns get ReLU(0 + 0) = 0 and are sliced off below).
    w0p = jnp.pad(w0, ((0, fc_in_p - fc_in), (0, d1_p - fc_dims1)))
    b0p = jnp.pad(b0, ((0, 0), (0, d1_p - fc_dims1)))
    w1p = jnp.pad(w1, ((0, d1_p - fc_dims1), (0, d2_p - fc_dims2)))
    b1p = jnp.pad(b1, ((0, 0), (0, d2_p - fc_dims2)))
    w2p = jnp.pad(w2, ((0, d2_p - fc_dims2), (0, c_p - class_num)))
    b2p = jnp.pad(b2, ((0, 0), (0, c_p - class_num)))

    # --- explicit VMEM budget: resident weights + double-buffered x/out tiles
    #     + in-kernel activations (bf16 casts + f32), with 2x headroom --------
    est_bytes = (
        (fc_in_p * d1_p + d1_p * d2_p + d2_p * c_p + d1_p + d2_p + c_p) * 4
        + 2 * tile_b * (fc_in_p + c_p) * 4
        + 4 * tile_b * (fc_in_p + d1_p + d2_p + c_p) * 4
    )
    vmem_limit = int(min(48 * 1024 * 1024, max(16 * 1024 * 1024, 2 * est_bytes)))

    grid = (pl.cdiv(batch_p, tile_b),)

    out_padded = pl.pallas_call(
        _mlp_kernel,
        out_shape=jax.ShapeDtypeStruct((batch_p, c_p), jnp.float32),
        grid=grid,
        in_specs=[
            pl.BlockSpec((tile_b, fc_in_p), lambda i: (i, 0)),   # x tile
            pl.BlockSpec((fc_in_p, d1_p), lambda i: (0, 0)),     # W0 (resident)
            pl.BlockSpec((1, d1_p), lambda i: (0, 0)),           # b0 (resident)
            pl.BlockSpec((d1_p, d2_p), lambda i: (0, 0)),        # W1 (resident)
            pl.BlockSpec((1, d2_p), lambda i: (0, 0)),           # b1 (resident)
            pl.BlockSpec((d2_p, c_p), lambda i: (0, 0)),         # W2 (resident)
            pl.BlockSpec((1, c_p), lambda i: (0, 0)),            # b2 (resident)
        ],
        out_specs=pl.BlockSpec((tile_b, c_p), lambda i: (i, 0)),
        compiler_params=pltpu.CompilerParams(
            dimension_semantics=("parallel",),   # shards batch tiles over v7x's 2 TCs
            vmem_limit_bytes=vmem_limit,
        ),
    )(o, w0p, b0p, w1p, b1p, w2p, b2p)

    # strip batch / class padding
    out = out_padded[:batch, :class_num]

    # epoch < 4 branch: gates are plain zero tensors (glue, kept in JAX).
    f_gate0 = jnp.zeros((fc_in, 1), jnp.float32)
    f_gate1 = jnp.zeros((fc_dims1, 1), jnp.float32)
    f_gate2 = jnp.zeros((fc_dims2, 1), jnp.float32)
    return out, f_gate0, f_gate1, f_gate2


def init_params(key, fc_in, fc_dims1, fc_dims2, class_num):
    """Deterministic Linear-style init; weights stored as (in, out)."""
    ks = jax.random.split(key, 6)

    def linear(kw, kb, fan_in, fan_out):
        bound = 1.0 / jnp.sqrt(fan_in)
        w = jax.random.uniform(kw, (fan_in, fan_out), jnp.float32, -bound, bound)
        b = jax.random.uniform(kb, (1, fan_out), jnp.float32, -bound, bound)
        return w, b

    w0, b0 = linear(ks[0], ks[1], fc_in, fc_dims1)
    w1, b1 = linear(ks[2], ks[3], fc_dims1, fc_dims2)
    w2, b2 = linear(ks[4], ks[5], fc_dims2, class_num)
    return (w0, b0, w1, b1, w2, b2)


def _ref_forward(o, params):
    """Pure-JAX reference matching the kernel's bf16-matmul / f32-accumulate math."""
    w0, b0, w1, b1, w2, b2 = params
    bf = jnp.bfloat16
    h0 = jnp.maximum(
        jnp.dot(o.astype(bf), w0.astype(bf), preferred_element_type=jnp.float32) + b0, 0.0)
    h1 = jnp.maximum(
        jnp.dot(h0.astype(bf), w1.astype(bf), preferred_element_type=jnp.float32) + b1, 0.0)
    return jnp.dot(h1.astype(bf), w2.astype(bf), preferred_element_type=jnp.float32) + b2


if __name__ == "__main__":
    # Small MNIST-like shapes: batch=2, 1x8x8 image -> fc_in=64.
    batch, C, H, W = 2, 1, 8, 8
    fc_in, fc_dims1, fc_dims2, class_num = C * H * W, 32, 16, 10

    key = jax.random.PRNGKey(0)
    k_x, k_p = jax.random.split(key)
    x = jax.random.normal(k_x, (batch, C, H, W), jnp.float32)
    params = init_params(k_p, fc_in, fc_dims1, fc_dims2, class_num)

    out, g0, g1, g2 = mlp_forward(x, params, epoch=0)
    jax.block_until_ready((out, g0, g1, g2))

    # Sanity check against pure-JAX references.
    o = x.reshape(batch, -1).astype(jnp.float32)
    ref_bf16 = _ref_forward(o, params)                       # same math as kernel
    ref_f32 = jnp.maximum(o @ params[0] + params[1], 0.0)    # full-precision reference
    ref_f32 = jnp.maximum(ref_f32 @ params[2] + params[3], 0.0)
    ref_f32 = ref_f32 @ params[4] + params[5]

    assert out.shape == (batch, class_num)
    assert g0.shape == (fc_in, 1) and g1.shape == (fc_dims1, 1) and g2.shape == (fc_dims2, 1)
    assert jnp.allclose(out, ref_bf16, atol=2e-3, rtol=2e-3), "mismatch vs bf16 reference"
    assert jnp.allclose(out, ref_f32, atol=5e-2, rtol=5e-2), "mismatch vs f32 reference"

    print("KERNEL_OK")
</pallas_src>

<mosaic_0001>
module attributes {stable_mosaic.version = 11 : i64} {
  func.func @_mlp_kernel(%arg0: i32, %arg1: memref<8x128xf32, #tpu.memory_space<vmem>>, %arg2: memref<128x128xf32, #tpu.memory_space<vmem>>, %arg3: memref<1x128xf32, #tpu.memory_space<vmem>>, %arg4: memref<128x128xf32, #tpu.memory_space<vmem>>, %arg5: memref<1x128xf32, #tpu.memory_space<vmem>>, %arg6: memref<128x128xf32, #tpu.memory_space<vmem>>, %arg7: memref<1x128xf32, #tpu.memory_space<vmem>>, %arg8: memref<8x128xf32, #tpu.memory_space<vmem>>) attributes {dimension_semantics = [#tpu.dimension_semantics<parallel>], iteration_bounds = array<i64: 1>, scalar_prefetch = 0 : i64, scratch_operands = 0 : i64, tpu.core_type = #tpu.core_type<tc>, window_params = [{transform_indices = @transform_0, window_bounds = array<i64: 8, 128>}, {pipeline_mode = #tpu.pipeline_mode<synchronous>, transform_indices = @transform_1, window_bounds = array<i64: 128, 128>}, {pipeline_mode = #tpu.pipeline_mode<synchronous>, transform_indices = @transform_2, window_bounds = array<i64: 1, 128>}, {pipeline_mode = #tpu.pipeline_mode<synchronous>, transform_indices = @transform_3, window_bounds = array<i64: 128, 128>}, {pipeline_mode = #tpu.pipeline_mode<synchronous>, transform_indices = @transform_4, window_bounds = array<i64: 1, 128>}, {pipeline_mode = #tpu.pipeline_mode<synchronous>, transform_indices = @transform_5, window_bounds = array<i64: 128, 128>}, {pipeline_mode = #tpu.pipeline_mode<synchronous>, transform_indices = @transform_6, window_bounds = array<i64: 1, 128>}, {transform_indices = @transform_7, window_bounds = array<i64: 8, 128>}]} {
    %c0 = arith.constant 0 : index
    %c0_0 = arith.constant 0 : index
    %0 = vector.load %arg1[%c0, %c0_0] : memref<8x128xf32, #tpu.memory_space<vmem>>, vector<8x128xf32>
    %1 = arith.truncf %0 : vector<8x128xf32> to vector<8x128xbf16>
    %c0_1 = arith.constant 0 : index
    %c0_2 = arith.constant 0 : index
    %2 = vector.load %arg2[%c0_1, %c0_2] : memref<128x128xf32, #tpu.memory_space<vmem>>, vector<128x128xf32>
    %3 = arith.truncf %2 : vector<128x128xf32> to vector<128x128xbf16>
    %cst = arith.constant dense<0.000000e+00> : vector<8x128xf32>
    %4 = tpu.matmul %1, %3, %cst {dimension_numbers = #tpu.dot_dimension_numbers<[1], [0], [0], [1], [0, 0, 1, 1], [], []>} : vector<8x128xbf16>, vector<128x128xbf16>, vector<8x128xf32> -> vector<8x128xf32>
    %c0_3 = arith.constant 0 : index
    %c0_4 = arith.constant 0 : index
    %5 = vector.load %arg3[%c0_3, %c0_4] : memref<1x128xf32, #tpu.memory_space<vmem>>, vector<1x128xf32>
    %6 = vector.broadcast %5 : vector<1x128xf32> to vector<8x128xf32>
    %7 = arith.addf %4, %6 : vector<8x128xf32>
    %cst_5 = arith.constant 0.000000e+00 : f32
    %8 = vector.broadcast %cst_5 : f32 to vector<8x128xf32>
    %9 = arith.maximumf %7, %8 : vector<8x128xf32>
    %10 = arith.truncf %9 : vector<8x128xf32> to vector<8x128xbf16>
    %c0_6 = arith.constant 0 : index
    %c0_7 = arith.constant 0 : index
    %11 = vector.load %arg4[%c0_6, %c0_7] : memref<128x128xf32, #tpu.memory_space<vmem>>, vector<128x128xf32>
    %12 = arith.truncf %11 : vector<128x128xf32> to vector<128x128xbf16>
    %cst_8 = arith.constant dense<0.000000e+00> : vector<8x128xf32>
    %13 = tpu.matmul %10, %12, %cst_8 {dimension_numbers = #tpu.dot_dimension_numbers<[1], [0], [0], [1], [0, 0, 1, 1], [], []>} : vector<8x128xbf16>, vector<128x128xbf16>, vector<8x128xf32> -> vector<8x128xf32>
    %c0_9 = arith.constant 0 : index
    %c0_10 = arith.constant 0 : index
    %14 = vector.load %arg5[%c0_9, %c0_10] : memref<1x128xf32, #tpu.memory_space<vmem>>, vector<1x128xf32>
    %15 = vector.broadcast %14 : vector<1x128xf32> to vector<8x128xf32>
    %16 = arith.addf %13, %15 : vector<8x128xf32>
    %cst_11 = arith.constant 0.000000e+00 : f32
    %17 = vector.broadcast %cst_11 : f32 to vector<8x128xf32>
    %18 = arith.maximumf %16, %17 : vector<8x128xf32>
    %19 = arith.truncf %18 : vector<8x128xf32> to vector<8x128xbf16>
    %c0_12 = arith.constant 0 : index
    %c0_13 = arith.constant 0 : index
    %20 = vector.load %arg6[%c0_12, %c0_13] : memref<128x128xf32, #tpu.memory_space<vmem>>, vector<128x128xf32>
    %21 = arith.truncf %20 : vector<128x128xf32> to vector<128x128xbf16>
    %cst_14 = arith.constant dense<0.000000e+00> : vector<8x128xf32>
    %22 = tpu.matmul %19, %21, %cst_14 {dimension_numbers = #tpu.dot_dimension_numbers<[1], [0], [0], [1], [0, 0, 1, 1], [], []>} : vector<8x128xbf16>, vector<128x128xbf16>, vector<8x128xf32> -> vector<8x128xf32>
    %c0_15 = arith.constant 0 : index
    %c0_16 = arith.constant 0 : index
    %23 = vector.load %arg7[%c0_15, %c0_16] : memref<1x128xf32, #tpu.memory_space<vmem>>, vector<1x128xf32>
    %24 = vector.broadcast %23 : vector<1x128xf32> to vector<8x128xf32>
    %25 = arith.addf %22, %24 : vector<8x128xf32>
    %c0_17 = arith.constant 0 : index
    %c0_18 = arith.constant 0 : index
    %26 = vector.load %arg8[%c0_17, %c0_18] : memref<8x128xf32, #tpu.memory_space<vmem>>, vector<8x128xf32>
    tpu.vector_store %arg8[%c0_17, %c0_18], %25 {strides = array<i32>} : memref<8x128xf32, #tpu.memory_space<vmem>>, vector<8x128xf32>,
    return
  }
  func.func @transform_0(%arg0: i32) -> (i32, i32) {
    %c0_i32 = arith.constant 0 : i32
    %c0_i32_0 = arith.constant 0 : i32
    return %arg0, %c0_i32 : i32, i32
  }
  func.func @transform_1(%arg0: i32) -> (i32, i32) {
    %c0_i32 = arith.constant 0 : i32
    %c0_i32_0 = arith.constant 0 : i32
    %c0_i32_1 = arith.constant 0 : i32
    return %c0_i32, %c0_i32_0 : i32, i32
  }
  func.func @transform_2(%arg0: i32) -> (i32, i32) {
    %c0_i32 = arith.constant 0 : i32
    %c0_i32_0 = arith.constant 0 : i32
    %c0_i32_1 = arith.constant 0 : i32
    return %c0_i32, %c0_i32_0 : i32, i32
  }
  func.func @transform_3(%arg0: i32) -> (i32, i32) {
    %c0_i32 = arith.constant 0 : i32
    %c0_i32_0 = arith.constant 0 : i32
    %c0_i32_1 = arith.constant 0 : i32
    return %c0_i32, %c0_i32_0 : i32, i32
  }
  func.func @transform_4(%arg0: i32) -> (i32, i32) {
    %c0_i32 = arith.constant 0 : i32
    %c0_i32_0 = arith.constant 0 : i32
    %c0_i32_1 = arith.constant 0 : i32
    return %c0_i32, %c0_i32_0 : i32, i32
  }
  func.func @transform_5(%arg0: i32) -> (i32, i32) {
    %c0_i32 = arith.constant 0 : i32
    %c0_i32_0 = arith.constant 0 : i32
    %c0_i32_1 = arith.constant 0 : i32
    return %c0_i32, %c0_i32_0 : i32, i32
  }
  func.func @transform_6(%arg0: i32) -> (i32, i32) {
    %c0_i32 = arith.constant 0 : i32
    %c0_i32_0 = arith.constant 0 : i32
    %c0_i32_1 = arith.constant 0 : i32
    return %c0_i32, %c0_i32_0 : i32, i32
  }
  func.func @transform_7(%arg0: i32) -> (i32, i32) {
    %c0_i32 = arith.constant 0 : i32
    %c0_i32_0 = arith.constant 0 : i32
    return %arg0, %c0_i32 : i32, i32
  }
}

</mosaic_0001>

<llo_original>
// kernel: mlp_forward.1
$region0: #{mlp_forward.1}
  #allocation0 [shape = 'u32[]', space=smem, size = 0x4, offset = 0x4, fixed_abs, tag = 'smem constant byte address 0x4 - core index']
  #allocation1 [shape = 'u32[144,128]{1,0:T(1,128)}', space=vmem, size = 0x12000, scoped, tag = 'internal scratch']
  %s0 = inlined_call_operand.vmem [shape: f32[8,128], index: 0, kind: input, shape index: {}]
  %s1 = inlined_call_operand.vmem [shape: f32[128,128], index: 1, kind: input, shape index: {}]
  %s2 = inlined_call_operand.vmem [shape: f32[1,128], index: 2, kind: input, shape index: {}]
  %s3 = inlined_call_operand.vmem [shape: f32[128,128], index: 3, kind: input, shape index: {}]
  %s4 = inlined_call_operand.vmem [shape: f32[1,128], index: 4, kind: input, shape index: {}]
  %s5 = inlined_call_operand.vmem [shape: f32[128,128], index: 5, kind: input, shape index: {}]
  %s6 = inlined_call_operand.vmem [shape: f32[1,128], index: 6, kind: input, shape index: {}]
  %s7 = inlined_call_operand.vmem [shape: f32[8,128], index: 7, kind: output, shape index: {}]
  %s8 = sld [smem:[#allocation0]]
  $region38: #{mlp_forward.1} parent=0
    _
  %s10 = ssub.s32 1, %s8
  %s11 = scalar_select 0, %s10, %s8
  // Predicated region
  $region2: #{mlp_forward.1} parent=0 // pred_check
    _
  $region3: #{mlp_forward.1} parent=0 // pred_check_branch
    %13 = sbr.rel (0) target = $region5
  $region4: #{mlp_forward.1} parent=0 // pred_region
    _
  $region5: #{mlp_forward.1} parent=0 // pred_fallthru
    _
  // Predicated region
  $region6: #{mlp_forward.1} parent=0 // pred_check
    _
  $region7: #{mlp_forward.1} parent=0 // pred_check_branch
    %15 = sbr.rel (0) target = $region9
  $region8: #{mlp_forward.1} parent=0 // pred_region
    _
  $region9: #{mlp_forward.1} parent=0 // pred_fallthru
    _
  // Predicated region
  $region10: #{mlp_forward.1} parent=0 // pred_check
    _
  $region11: #{mlp_forward.1} parent=0 // pred_check_branch
    %17 = sbr.rel (0) target = $region13
  $region12: #{mlp_forward.1} parent=0 // pred_region
    _
  $region13: #{mlp_forward.1} parent=0 // pred_fallthru
    _
  // Predicated region
  $region14: #{mlp_forward.1} parent=0 // pred_check
    _
  $region15: #{mlp_forward.1} parent=0 // pred_check_branch
    %19 = sbr.rel (0) target = $region17
  $region16: #{mlp_forward.1} parent=0 // pred_region
    _
  $region17: #{mlp_forward.1} parent=0 // pred_fallthru
    _
  // Predicated region
  $region18: #{mlp_forward.1} parent=0 // pred_check
    _
  $region19: #{mlp_forward.1} parent=0 // pred_check_branch
    %21 = sbr.rel (0) target = $region21
  $region20: #{mlp_forward.1} parent=0 // pred_region
    _
  $region21: #{mlp_forward.1} parent=0 // pred_fallthru
    _
  // Predicated region
  $region22: #{mlp_forward.1} parent=0 // pred_check
    _
  $region23: #{mlp_forward.1} parent=0 // pred_check_branch
    %23 = sbr.rel (0) target = $region25
  $region24: #{mlp_forward.1} parent=0 // pred_region
    _
  $region25: #{mlp_forward.1} parent=0 // pred_fallthru
    _
  // Predicated region
  $region26: #{mlp_forward.1} parent=0 // pred_check
    _
  $region27: #{mlp_forward.1} parent=0 // pred_check_branch
    %25 = sbr.rel (0) target = $region29
  $region28: #{mlp_forward.1} parent=0 // pred_region
    _
  $region29: #{mlp_forward.1} parent=0 // pred_fallthru
    _
  %v27 = vld [vmem:[%s0] sm:$0xff]
  %v28 = vpack.c.bf16 %v27, %v27
  %v29 = vld [vmem:[%s1] sm:$0xff]
  %v30 = vld [vmem:[%s1 + $0x8] sm:$0xff]
  %v31 = vld [vmem:[%s1 + $0x10] sm:$0xff]
  %v32 = vld [vmem:[%s1 + $0x18] sm:$0xff]
  %v33 = vld [vmem:[%s1 + $0x20] sm:$0xff]
  %v34 = vld [vmem:[%s1 + $0x28] sm:$0xff]
  %v35 = vld [vmem:[%s1 + $0x30] sm:$0xff]
  %v36 = vld [vmem:[%s1 + $0x38] sm:$0xff]
  %v37 = vld [vmem:[%s1 + $0x40] sm:$0xff]
  %v38 = vld [vmem:[%s1 + $0x48] sm:$0xff]
  %v39 = vld [vmem:[%s1 + $0x50] sm:$0xff]
  %v40 = vld [vmem:[%s1 + $0x58] sm:$0xff]
  %v41 = vld [vmem:[%s1 + $0x60] sm:$0xff]
  %v42 = vld [vmem:[%s1 + $0x68] sm:$0xff]
  %v43 = vld [vmem:[%s1 + $0x70] sm:$0xff]
  %v44 = vld [vmem:[%s1 + $0x78] sm:$0xff]
  %v45 = vpack.c.bf16 %v30, %v29
  %v46 = vpack.c.bf16 %v32, %v31
  %v47 = vpack.c.bf16 %v34, %v33
  %v48 = vpack.c.bf16 %v36, %v35
  %v49 = vpack.c.bf16 %v38, %v37
  %v50 = vpack.c.bf16 %v40, %v39
  %v51 = vpack.c.bf16 %v42, %v41
  %v52 = vpack.c.bf16 %v44, %v43
  %v53 = vld [vmem:[%s2] sm:$0x1]
  %v55 = vlaneseq
  %v56 = vshrl.u32 %v55, 7
  %v57 = vsub.s32 0, %v56
  %v58 = vrot.slane %v53, %v57
  %60 = vmatprep.subr.bf16.mxu0 0
  %61 = vmatpush1.bf16.msra.mxu0 %v45
  %62 = vmatprep.subr.bf16.mxu0 0
  %63 = vmatpush1.bf16.msra.mxu0 %v46
  %64 = vmatprep.subr.bf16.mxu0 0
  %65 = vmatpush1.bf16.msra.mxu0 %v47
  %66 = vmatprep.subr.bf16.mxu0 0
  %67 = vmatpush1.bf16.msra.mxu0 %v48
  %68 = vmatprep.subr.bf16.mxu0 0
  %69 = vmatpush1.bf16.msra.mxu0 %v49
  %70 = vmatprep.subr.bf16.mxu0 0
  %71 = vmatpush1.bf16.msra.mxu0 %v50
  %72 = vmatprep.subr.bf16.mxu0 0
  %73 = vmatpush1.bf16.msra.mxu0 %v51
  %74 = vmatprep.subr.bf16.mxu0 0
  %75 = vmatpush1.bf16.msra.mxu0 %v52
  %76 = vmatprep.subr.bf16.mxu0 0
  %77 = vmatpush1.bf16.msra.mxu0 0
  %78 = vmatprep.subr.bf16.mxu0 0
  %79 = vmatpush1.bf16.msra.mxu0 0
  %80 = vmatprep.subr.bf16.mxu0 0
  %81 = vmatpush1.bf16.msra.mxu0 0
  %82 = vmatprep.subr.bf16.mxu0 0
  %83 = vmatpush1.bf16.msra.mxu0 0
  %84 = vmatprep.subr.bf16.mxu0 0
  %85 = vmatpush1.bf16.msra.mxu0 0
  %86 = vmatprep.subr.bf16.mxu0 0
  %87 = vmatpush1.bf16.msra.mxu0 0
  %88 = vmatprep.subr.bf16.mxu0 0
  %89 = vmatpush1.bf16.msra.mxu0 0
  %90 = vmatprep.subr.bf16.mxu0 0
  %91 = vmatpush1.bf16.msra.mxu0 0
  %92 = vmatprep.mubr.bf16.mxu0 0
  %93 = vmatmul.mubr.bf16.gmra.mrb[0].mxu0 %v28
  %v94 = vpop.f32.mrb[0].mxu0
  %v95 = vadd.f32 %v58, %v94
  %v96 = vpop.f32.mrb[0].mxu0
  %v97 = vpop.f32.mrb[0].mxu0
  %v98 = vpop.f32.mrb[0].mxu0
  %99 = vdwg.mxu0
  %v100 = vmax.f32 %v95, 0.0
  %v101 = vpack.c.bf16 %v100, %v100
  %v102 = vld [vmem:[%s3] sm:$0xff]
  %v103 = vld [vmem:[%s3 + $0x8] sm:$0xff]
  %v104 = vld [vmem:[%s3 + $0x10] sm:$0xff]
  %v105 = vld [vmem:[%s3 + $0x18] sm:$0xff]
  %v106 = vld [vmem:[%s3 + $0x20] sm:$0xff]
  %v107 = vld [vmem:[%s3 + $0x28] sm:$0xff]
  %v108 = vld [vmem:[%s3 + $0x30] sm:$0xff]
  %v109 = vld [vmem:[%s3 + $0x38] sm:$0xff]
  %v110 = vld [vmem:[%s3 + $0x40] sm:$0xff]
  %v111 = vld [vmem:[%s3 + $0x48] sm:$0xff]
  %v112 = vld [vmem:[%s3 + $0x50] sm:$0xff]
  %v113 = vld [vmem:[%s3 + $0x58] sm:$0xff]
  %v114 = vld [vmem:[%s3 + $0x60] sm:$0xff]
  %v115 = vld [vmem:[%s3 + $0x68] sm:$0xff]
  %v116 = vld [vmem:[%s3 + $0x70] sm:$0xff]
  %v117 = vld [vmem:[%s3 + $0x78] sm:$0xff]
  %v118 = vpack.c.bf16 %v103, %v102
  %v119 = vpack.c.bf16 %v105, %v104
  %v120 = vpack.c.bf16 %v107, %v106
  %v121 = vpack.c.bf16 %v109, %v108
  %v122 = vpack.c.bf16 %v111, %v110
  %v123 = vpack.c.bf16 %v113, %v112
  %v124 = vpack.c.bf16 %v115, %v114
  %v125 = vpack.c.bf16 %v117, %v116
  %v126 = vld [vmem:[%s4] sm:$0x1]
  %v128 = vlaneseq
  %v129 = vshrl.u32 %v128, 7
  %v130 = vsub.s32 0, %v129
  %v131 = vrot.slane %v126, %v130
  %133 = vmatprep.subr.bf16.mxu0 0
  %134 = vmatpush1.bf16.msra.mxu0 %v118
  %135 = vmatprep.subr.bf16.mxu0 0
  %136 = vmatpush1.bf16.msra.mxu0 %v119
  %137 = vmatprep.subr.bf16.mxu0 0
  %138 = vmatpush1.bf16.msra.mxu0 %v120
  %139 = vmatprep.subr.bf16.mxu0 0
  %140 = vmatpush1.bf16.msra.mxu0 %v121
  %141 = vmatprep.subr.bf16.mxu0 0
  %142 = vmatpush1.bf16.msra.mxu0 %v122
  %143 = vmatprep.subr.bf16.mxu0 0
  %144 = vmatpush1.bf16.msra.mxu0 %v123
  %145 = vmatprep.subr.bf16.mxu0 0
  %146 = vmatpush1.bf16.msra.mxu0 %v124
  %147 = vmatprep.subr.bf16.mxu0 0
  %148 = vmatpush1.bf16.msra.mxu0 %v125
  %149 = vmatprep.subr.bf16.mxu0 0
  %150 = vmatpush1.bf16.msra.mxu0 0
  %151 = vmatprep.subr.bf16.mxu0 0
  %152 = vmatpush1.bf16.msra.mxu0 0
  %153 = vmatprep.subr.bf16.mxu0 0
  %154 = vmatpush1.bf16.msra.mxu0 0
  %155 = vmatprep.subr.bf16.mxu0 0
  %156 = vmatpush1.bf16.msra.mxu0 0
  %157 = vmatprep.subr.bf16.mxu0 0
  %158 = vmatpush1.bf16.msra.mxu0 0
  %159 = vmatprep.subr.bf16.mxu0 0
  %160 = vmatpush1.bf16.msra.mxu0 0
  %161 = vmatprep.subr.bf16.mxu0 0
  %162 = vmatpush1.bf16.msra.mxu0 0
  %163 = vmatprep.subr.bf16.mxu0 0
  %164 = vmatpush1.bf16.msra.mxu0 0
  %165 = vmatprep.mubr.bf16.mxu0 0
  %166 = vmatmul.mubr.bf16.gmra.mrb[0].mxu0 %v101
  %v167 = vpop.f32.mrb[0].mxu0
  %v168 = vadd.f32 %v131, %v167
  %v169 = vpop.f32.mrb[0].mxu0
  %v170 = vpop.f32.mrb[0].mxu0
  %v171 = vpop.f32.mrb[0].mxu0
  %172 = vdwg.mxu0
  %v173 = vmax.f32 %v168, 0.0
  %v174 = vpack.c.bf16 %v173, %v173
  %v175 = vld [vmem:[%s5] sm:$0xff]
  %v176 = vld [vmem:[%s5 + $0x8] sm:$0xff]
  %v177 = vld [vmem:[%s5 + $0x10] sm:$0xff]
  %v178 = vld [vmem:[%s5 + $0x18] sm:$0xff]
  %v179 = vld [vmem:[%s5 + $0x20] sm:$0xff]
  %v180 = vld [vmem:[%s5 + $0x28] sm:$0xff]
  %v181 = vld [vmem:[%s5 + $0x30] sm:$0xff]
  %v182 = vld [vmem:[%s5 + $0x38] sm:$0xff]
  %v183 = vld [vmem:[%s5 + $0x40] sm:$0xff]
  %v184 = vld [vmem:[%s5 + $0x48] sm:$0xff]
  %v185 = vld [vmem:[%s5 + $0x50] sm:$0xff]
  %v186 = vld [vmem:[%s5 + $0x58] sm:$0xff]
  %v187 = vld [vmem:[%s5 + $0x60] sm:$0xff]
  %v188 = vld [vmem:[%s5 + $0x68] sm:$0xff]
  %v189 = vld [vmem:[%s5 + $0x70] sm:$0xff]
  %v190 = vld [vmem:[%s5 + $0x78] sm:$0xff]
  %v191 = vpack.c.bf16 %v176, %v175
  %v192 = vpack.c.bf16 %v178, %v177
  %v193 = vpack.c.bf16 %v180, %v179
  %v194 = vpack.c.bf16 %v182, %v181
  %v195 = vpack.c.bf16 %v184, %v183
  %v196 = vpack.c.bf16 %v186, %v185
  %v197 = vpack.c.bf16 %v188, %v187
  %v198 = vpack.c.bf16 %v190, %v189
  %v199 = vld [vmem:[%s6] sm:$0x1]
  %v201 = vlaneseq
  %v202 = vshrl.u32 %v201, 7
  %v203 = vsub.s32 0, %v202
  %v204 = vrot.slane %v199, %v203
  %206 = vmatprep.subr.bf16.mxu0 0
  %207 = vmatpush1.bf16.msra.mxu0 %v191
  %208 = vmatprep.subr.bf16.mxu0 0
  %209 = vmatpush1.bf16.msra.mxu0 %v192
  %210 = vmatprep.subr.bf16.mxu0 0
  %211 = vmatpush1.bf16.msra.mxu0 %v193
  %212 = vmatprep.subr.bf16.mxu0 0
  %213 = vmatpush1.bf16.msra.mxu0 %v194
  %214 = vmatprep.subr.bf16.mxu0 0
  %215 = vmatpush1.bf16.msra.mxu0 %v195
  %216 = vmatprep.subr.bf16.mxu0 0
  %217 = vmatpush1.bf16.msra.mxu0 %v196
  %218 = vmatprep.subr.bf16.mxu0 0
  %219 = vmatpush1.bf16.msra.mxu0 %v197
  %220 = vmatprep.subr.bf16.mxu0 0
  %221 = vmatpush1.bf16.msra.mxu0 %v198
  %222 = vmatprep.subr.bf16.mxu0 0
  %223 = vmatpush1.bf16.msra.mxu0 0
  %224 = vmatprep.subr.bf16.mxu0 0
  %225 = vmatpush1.bf16.msra.mxu0 0
  %226 = vmatprep.subr.bf16.mxu0 0
  %227 = vmatpush1.bf16.msra.mxu0 0
  %228 = vmatprep.subr.bf16.mxu0 0
  %229 = vmatpush1.bf16.msra.mxu0 0
  %230 = vmatprep.subr.bf16.mxu0 0
  %231 = vmatpush1.bf16.msra.mxu0 0
  %232 = vmatprep.subr.bf16.mxu0 0
  %233 = vmatpush1.bf16.msra.mxu0 0
  %234 = vmatprep.subr.bf16.mxu0 0
  %235 = vmatpush1.bf16.msra.mxu0 0
  %236 = vmatprep.subr.bf16.mxu0 0
  %237 = vmatpush1.bf16.msra.mxu0 0
  %238 = vmatprep.mubr.bf16.mxu0 0
  %239 = vmatmul.mubr.bf16.gmra.mrb[0].mxu0 %v174
  %v240 = vpop.f32.mrb[0].mxu0
  %v241 = vadd.f32 %v204, %v240
  %v242 = vpop.f32.mrb[0].mxu0
  %v243 = vpop.f32.mrb[0].mxu0
  %v244 = vpop.f32.mrb[0].mxu0
  %245 = vdwg.mxu0
  %246 = vst [vmem:[%s7] sm:$0xff] %v241
  // Predicated region
  $region30: #{mlp_forward.1} parent=0 // pred_check
    _
  $region31: #{mlp_forward.1} parent=0 // pred_check_branch
    %248 = sbr.rel (0) target = $region33
  $region32: #{mlp_forward.1} parent=0 // pred_region
    _
  $region33: #{mlp_forward.1} parent=0 // pred_fallthru
    _
  // Predicated region
  $region34: #{mlp_forward.1} parent=0 // pred_check
    _
  $region35: #{mlp_forward.1} parent=0 // pred_check_branch
    %250 = sbr.rel (0) target = $region37
  $region36: #{mlp_forward.1} parent=0 // pred_region
    _
  $region37: #{mlp_forward.1} parent=0 // pred_fallthru
    _

</llo_original>
